<compile_context>
chip_gen: v7x
topology: tpu7x:2x2x1
jax: 0.10.0
libtpu: 0.0.40
codegen_flags: <defaults>
</compile_context>

<pallas_src>
import jax
import jax.numpy as jnp
from jax import lax
from jax.experimental import pallas as pl
from jax.experimental.pallas import tpu as pltpu


def _downward_conv_kernel(x_ref, v_ref, g_ref, b_ref, o_ref):
    # x_ref: (N, K, HW)      im2col'd input, full batch
    # v_ref: (C_out, K)      weight_norm direction tensor, unfolded
    # g_ref: (C_out, 1)      weight_norm magnitude
    # b_ref: (C_out, 1)      bias
    # o_ref: (N, C_out, HW)  lane-dense output (HW = 256 lanes)

    # --- weight-norm re-parameterization in-kernel (matches PyTorch: no eps) ---
    v = v_ref[...]                                            # (C_out, K) f32
    norm_sq = jnp.sum(v * v, axis=1, keepdims=True)           # XLU cross-lane reduce
    scale = g_ref[...] * lax.rsqrt(norm_sq)                   # EUP rsqrt, (C_out, 1)
    w = v * scale                                             # (C_out, K)
    b = b_ref[...]                                            # (C_out, 1)

    # --- one fused MXU matmul per batch element, static unrolled (N is tiny) ---
    n = x_ref.shape[0]
    for i in range(n):
        acc = jnp.dot(w, x_ref[i], preferred_element_type=jnp.float32)   # (C_out, HW)
        o_ref[i] = (acc + b).astype(o_ref.dtype)              # fused bias + cast, 256-lane store


def downward_conv_pallas(x_nchw, v, g, bias, kernel_size=(2, 3), stride=(1, 1)):
    """Forward pass of `downward_conv` (top_pad_output=False).

    x_nchw : (N, C_in, H, W)        float32
    v      : (C_out, C_in, KH, KW)  weight_norm direction tensor
    g      : (C_out,)               weight_norm magnitude
    bias   : (C_out,)
    returns: (N, C_out, H_out, W_out)
    """
    assert stride == (1, 1), "reference module is used with stride=(1,1)"
    kh, kw = kernel_size
    n, c_in, h, w = x_nchw.shape
    c_out = v.shape[0]

    pw = (kw - 1) // 2
    h_out = h                        # top pad = kh-1, VALID conv -> same height
    w_out = w + 2 * pw - kw + 1      # == w for odd kw (module default kw=3)
    hw = h_out * w_out
    k = kh * kw * c_in

    # --- glue: unfold v to (C_out, K), K ordered (i, j, ci); weight-norm happens in-kernel ---
    v_mat = jnp.transpose(v.astype(jnp.float32), (0, 2, 3, 1)).reshape(c_out, k)   # (C_out, K)
    g_col = g.astype(jnp.float32).reshape(c_out, 1)
    b_col = bias.astype(jnp.float32).reshape(c_out, 1)

    # --- glue: causal pad + im2col tap-unfold, K ordered (i, j, ci) to match v_mat ---
    x_pad = jnp.pad(x_nchw, ((0, 0), (0, 0), (kh - 1, 0), (pw, pw)))    # (N, C_in, H_pad, W_pad)
    taps = [x_pad[:, :, i:i + h_out, j:j + w_out]
            for i in range(kh) for j in range(kw)]                      # each (N, C_in, H_out, W_out)
    x_col = jnp.stack(taps, axis=1).reshape(n, k, hw)                   # (N, K, H_out*W_out)

    cost = pl.CostEstimate(
        flops=2 * n * c_out * hw * k,
        transcendentals=c_out,
        bytes_accessed=4 * (n * k * hw + c_out * k + 2 * c_out + n * c_out * hw),
    )

    out = pl.pallas_call(
        _downward_conv_kernel,
        out_shape=jax.ShapeDtypeStruct((n, c_out, hw), x_nchw.dtype),
        # No grid: single invocation, full-array VMEM blocks (everything is KB-scale).
        in_specs=[
            pl.BlockSpec((n, k, hw), lambda: (0, 0, 0)),
            pl.BlockSpec((c_out, k), lambda: (0, 0)),
            pl.BlockSpec((c_out, 1), lambda: (0, 0)),
            pl.BlockSpec((c_out, 1), lambda: (0, 0)),
        ],
        out_specs=pl.BlockSpec((n, c_out, hw), lambda: (0, 0, 0)),
        cost_estimate=cost,
    )(x_col, v_mat, g_col, b_col)

    # (N, C_out, H*W) -> (N, C_out, H, W): contiguous reshape, no transpose needed.
    return out.reshape(n, c_out, h_out, w_out)


def _reference(x_nchw, v, g, bias, kernel_size=(2, 3)):
    """Pure-JAX reference (lax conv) for a correctness check."""
    kh, kw = kernel_size
    v_norm = jnp.sqrt(jnp.sum(v ** 2, axis=(1, 2, 3), keepdims=True))
    weight = g[:, None, None, None] * v / v_norm               # OIHW
    pw = (kw - 1) // 2
    x_pad = jnp.pad(x_nchw, ((0, 0), (0, 0), (kh - 1, 0), (pw, pw)))
    out = jax.lax.conv_general_dilated(
        x_pad, weight, window_strides=(1, 1), padding="VALID",
        dimension_numbers=("NCHW", "OIHW", "NCHW"))
    return out + bias[None, :, None, None]


if __name__ == "__main__":
    key = jax.random.PRNGKey(0)
    k_x, k_v, k_g, k_b = jax.random.split(key, 4)

    # small shapes consistent with the module: batch=2, C_in=4, C_out=8, 16x16 spatial
    N, C_IN, C_OUT, H, W = 2, 4, 8, 16, 16
    KH, KW = 2, 3

    x = jax.random.normal(k_x, (N, C_IN, H, W), dtype=jnp.float32)
    v = jax.random.normal(k_v, (C_OUT, C_IN, KH, KW), dtype=jnp.float32) * 0.1
    g = 1.0 + 0.05 * jax.random.normal(k_g, (C_OUT,), dtype=jnp.float32)
    bias = 0.01 * jax.random.normal(k_b, (C_OUT,), dtype=jnp.float32)

    out = downward_conv_pallas(x, v, g, bias)
    out = jax.block_until_ready(out)

    ref = jax.block_until_ready(_reference(x, v, g, bias))
    assert out.shape == (N, C_OUT, H, W)
    assert jnp.allclose(out, ref, atol=1e-4, rtol=1e-4), "mismatch vs. reference conv"

    # top_pad_output=False in the default module config, so no down_shift branch.
    # TODO(synk): down_shift (top_pad_output=True path) is undefined in the reference source.
    print("KERNEL_OK")
</pallas_src>

<mosaic_0001>
module attributes {stable_mosaic.version = 11 : i64} {
  func.func @_downward_conv_kernel(%arg0: memref<2x24x256xf32, #tpu.memory_space<vmem>>, %arg1: memref<8x24xf32, #tpu.memory_space<vmem>>, %arg2: memref<8x1xf32, #tpu.memory_space<vmem>>, %arg3: memref<8x1xf32, #tpu.memory_space<vmem>>, %arg4: memref<2x8x256xf32, #tpu.memory_space<vmem>>) attributes {dimension_semantics = [], scalar_prefetch = 0 : i64, scratch_operands = 0 : i64, tpu.core_type = #tpu.core_type<tc>} {
    %c0 = arith.constant 0 : index
    %c0_0 = arith.constant 0 : index
    %0 = vector.load %arg1[%c0, %c0_0] : memref<8x24xf32, #tpu.memory_space<vmem>>, vector<8x24xf32>
    %1 = arith.mulf %0, %0 : vector<8x24xf32>
    %cst = arith.constant dense<0.000000e+00> : vector<8xf32>
    %2 = vector.multi_reduction <add>, %1, %cst [1] : vector<8x24xf32> to vector<8xf32>
    %3 = vector.shape_cast %2 : vector<8xf32> to vector<8x1xf32>
    %c0_1 = arith.constant 0 : index
    %c0_2 = arith.constant 0 : index
    %4 = vector.load %arg2[%c0_1, %c0_2] : memref<8x1xf32, #tpu.memory_space<vmem>>, vector<8x1xf32>
    %5 = math.rsqrt %3 : vector<8x1xf32>
    %6 = arith.mulf %4, %5 : vector<8x1xf32>
    %7 = vector.broadcast %6 : vector<8x1xf32> to vector<8x24xf32>
    %8 = arith.mulf %0, %7 : vector<8x24xf32>
    %c0_3 = arith.constant 0 : index
    %c0_4 = arith.constant 0 : index
    %9 = vector.load %arg3[%c0_3, %c0_4] : memref<8x1xf32, #tpu.memory_space<vmem>>, vector<8x1xf32>
    %c0_5 = arith.constant 0 : index
    %c0_6 = arith.constant 0 : index
    %c0_7 = arith.constant 0 : index
    %10 = vector.load %arg0[%c0_5, %c0_6, %c0_7] : memref<2x24x256xf32, #tpu.memory_space<vmem>>, vector<1x24x256xf32>
    %11 = vector.shape_cast %10 : vector<1x24x256xf32> to vector<24x256xf32>
    %cst_8 = arith.constant dense<0.000000e+00> : vector<8x256xf32>
    %12 = tpu.matmul %8, %11, %cst_8 {dimension_numbers = #tpu.dot_dimension_numbers<[1], [0], [0], [1], [0, 0, 1, 1], [], []>} : vector<8x24xf32>, vector<24x256xf32>, vector<8x256xf32> -> vector<8x256xf32>
    %13 = vector.broadcast %9 : vector<8x1xf32> to vector<8x256xf32>
    %14 = arith.addf %12, %13 : vector<8x256xf32>
    %c0_9 = arith.constant 0 : index
    %c0_10 = arith.constant 0 : index
    %c0_11 = arith.constant 0 : index
    %15 = vector.load %arg4[%c0_9, %c0_10, %c0_11] : memref<2x8x256xf32, #tpu.memory_space<vmem>>, vector<1x8x256xf32>
    %16 = vector.shape_cast %15 : vector<1x8x256xf32> to vector<8x256xf32>
    %17 = vector.shape_cast %14 : vector<8x256xf32> to vector<1x8x256xf32>
    tpu.vector_store %arg4[%c0_9, %c0_10, %c0_11], %17 {strides = array<i32>} : memref<2x8x256xf32, #tpu.memory_space<vmem>>, vector<1x8x256xf32>,
    %c1 = arith.constant 1 : index
    %c0_12 = arith.constant 0 : index
    %c0_13 = arith.constant 0 : index
    %18 = vector.load %arg0[%c1, %c0_12, %c0_13] : memref<2x24x256xf32, #tpu.memory_space<vmem>>, vector<1x24x256xf32>
    %19 = vector.shape_cast %18 : vector<1x24x256xf32> to vector<24x256xf32>
    %cst_14 = arith.constant dense<0.000000e+00> : vector<8x256xf32>
    %20 = tpu.matmul %8, %19, %cst_14 {dimension_numbers = #tpu.dot_dimension_numbers<[1], [0], [0], [1], [0, 0, 1, 1], [], []>} : vector<8x24xf32>, vector<24x256xf32>, vector<8x256xf32> -> vector<8x256xf32>
    %21 = vector.broadcast %9 : vector<8x1xf32> to vector<8x256xf32>
    %22 = arith.addf %20, %21 : vector<8x256xf32>
    %c1_15 = arith.constant 1 : index
    %c0_16 = arith.constant 0 : index
    %c0_17 = arith.constant 0 : index
    %23 = vector.load %arg4[%c1_15, %c0_16, %c0_17] : memref<2x8x256xf32, #tpu.memory_space<vmem>>, vector<1x8x256xf32>
    %24 = vector.shape_cast %23 : vector<1x8x256xf32> to vector<8x256xf32>
    %25 = vector.shape_cast %22 : vector<8x256xf32> to vector<1x8x256xf32>
    tpu.vector_store %arg4[%c1_15, %c0_16, %c0_17], %25 {strides = array<i32>} : memref<2x8x256xf32, #tpu.memory_space<vmem>>, vector<1x8x256xf32>,
    return
  }
}

</mosaic_0001>

<llo_original>
// kernel: tpu_custom_call.1
$region0: #{tpu_custom_call.1}
  #allocation0 [shape = 'u32[]', space=smem, size = 0x4, offset = 0x4, fixed_abs, tag = 'smem constant byte address 0x4 - core index']
  #allocation1 [shape = 'u32[144,128]{1,0:T(1,128)}', space=vmem, size = 0x12000, scoped, tag = 'internal scratch']
  %s0 = inlined_call_operand.hbm [shape: f32[2,24,256], index: 0, kind: input, shape index: {}]
  %s1 = inlined_call_operand.vmem [shape: f32[8,24], index: 1, kind: input, shape index: {}]
  %s2 = inlined_call_operand.vmem [shape: f32[8,1], index: 2, kind: input, shape index: {}]
  %s3 = inlined_call_operand.vmem [shape: f32[8,1], index: 3, kind: input, shape index: {}]
  %s4 = inlined_call_operand.hbm [shape: f32[2,8,256], index: 4, kind: output, shape index: {}]
  %s5 = sld [smem:[#allocation0]]
  $region30: #{tpu_custom_call.1} parent=0
    _
  %s7 = ssub.s32 1, %s5
  %s8 = scalar_select 0, %s7, %s5
  $region1: #{tpu_custom_call.1} parent=0
    #allocation2 [shape = 'u8[49152]{0}', space=vmem, size = 0xc000, scoped, tag = 'input window, operand 0, single buffered']
    #allocation3 [shape = 's32[1]{0}', space=sflag, size = 0x4, scoped, tag = 'scoped memory for tpu_custom_call.1']
    #allocation4 [shape = 's32[1]{0}', space=sflag, size = 0x4, scoped, tag = 'scoped memory for tpu_custom_call.1']
    #allocation5 [shape = 'u8[16384]{0}', space=vmem, size = 0x4000, scoped, tag = 'output window, operand 0, single buffered']
    %9 = vsyncpa [#allocation3], 0
    %10 = vsyncpa [#allocation4], 0
    // Predicated region
    $region2: #{tpu_custom_call.1} parent=1 // pred_check
      _
    $region3: #{tpu_custom_call.1} parent=1 // pred_check_branch
      %12 = sbr.rel (0) target = $region5
    $region4: #{tpu_custom_call.1} parent=1 // pred_region
      %s14 = ssub.s32 1536, 1536
      %15 = vsyncadd [#allocation3], %s14
      %s16 = sshll.u32 [#allocation2], 4
      %s17 = int_to_ptr.vmem [resolvable:$true] %s16
      %22 = dma.hbm_to_vmem [thread:$0]  %s0, 1536, %s17, [#allocation3], 256, 256, 16
    $region5: #{tpu_custom_call.1} parent=1 // pred_fallthru
      _
    // Predicated region
    $region6: #{tpu_custom_call.1} parent=1 // pred_check
      _
    $region7: #{tpu_custom_call.1} parent=1 // pred_check_branch
      %24 = sbr.rel (0) target = $region9
    $region8: #{tpu_custom_call.1} parent=1 // pred_region
      _
    $region9: #{tpu_custom_call.1} parent=1 // pred_fallthru
      _
    // Predicated region
    $region10: #{tpu_custom_call.1} parent=1 // pred_check
      _
    $region11: #{tpu_custom_call.1} parent=1 // pred_check_branch
      %26 = sbr.rel (0) target = $region13
    $region12: #{tpu_custom_call.1} parent=1 // pred_region
      _
    $region13: #{tpu_custom_call.1} parent=1 // pred_fallthru
      _
    // Predicated region
    $region14: #{tpu_custom_call.1} parent=1 // pred_check
      _
    $region15: #{tpu_custom_call.1} parent=1 // pred_check_branch
      %28 = sbr.rel (0) target = $region17
    $region16: #{tpu_custom_call.1} parent=1 // pred_region
      _
    $region17: #{tpu_custom_call.1} parent=1 // pred_fallthru
      _
    // Predicated region
    $region18: #{tpu_custom_call.1} parent=1 // pred_check
      _
    $region19: #{tpu_custom_call.1} parent=1 // pred_check_branch
      %30 = sbr.rel (0) target = $region21
    $region20: #{tpu_custom_call.1} parent=1 // pred_region
      %31 = dma.done [#allocation3], 1536
    $region21: #{tpu_custom_call.1} parent=1 // pred_fallthru
      _
    %v32 = vld [vmem:[%s1] sm:$0xff]
    %v33 = vmul.f32 %v32, %v32
    %vm34 = vcmask 195584
    %v35 = vsel %vm34, %v33, 0.0
    %36 = vadd.xlane.f32.xlu0 %v35
    %v37 = vpop.xlane.xlu0 %36
    %v38 = vld [vmem:[%s2] sm:$0xff]
    %v39 = vrsqrt.pop %v37
    %v40 = vmul.f32 %v38, %v39
    %42 = vset.pattern.permute.xlu0 0
    %43 = vperm.xlu0 %42, %v40
    %v44 = vpop.permute.xlu0 %43
    %v46 = vmul.f32 %v32, %v44
    %v47 = vld [vmem:[%s3] sm:$0xff]
    %v48 = vld [vmem:[#allocation2] sm:$0xff]
    %v49 = vld [vmem:[#allocation2 + $0x8] sm:$0xff]
    %v50 = vld [vmem:[#allocation2 + $0x10] sm:$0xff]
    %v51 = vld [vmem:[#allocation2 + $0x18] sm:$0xff]
    %v52 = vld [vmem:[#allocation2 + $0x20] sm:$0xff]
    %v53 = vld [vmem:[#allocation2 + $0x28] sm:$0xff]
    %55 = vset.pattern.permute.xlu0 0
    %56 = vperm.xlu0 %55, %v47
    %v57 = vpop.permute.xlu0 %56
    %v60 = vsel %vm34, %v46, 0
    %62 = vmatprep.subr.mxu0 %v49
    %63 = vmatpush1.msra.mxu0 %v48
    %64 = vmatprep.subr.mxu0 %v51
    %65 = vmatpush1.msra.mxu0 %v50
    %66 = vmatprep.subr.mxu0 %v53
    %67 = vmatpush1.msra.mxu0 %v52
    %68 = vmatprep.subr.mxu0 0.0
    %69 = vmatpush1.msra.mxu0 0.0
    %70 = vmatprep.subr.mxu0 0.0
    %71 = vmatpush1.msra.mxu0 0.0
    %72 = vmatprep.subr.mxu0 0.0
    %73 = vmatpush1.msra.mxu0 0.0
    %74 = vmatprep.subr.mxu0 0.0
    %75 = vmatpush1.msra.mxu0 0.0
    %76 = vmatprep.subr.mxu0 0.0
    %77 = vmatpush1.msra.mxu0 0.0
    %78 = vmatprep.subr.mxu0 0.0
    %79 = vmatpush1.msra.mxu0 0.0
    %80 = vmatprep.subr.mxu0 0.0
    %81 = vmatpush1.msra.mxu0 0.0
    %82 = vmatprep.subr.mxu0 0.0
    %83 = vmatpush1.msra.mxu0 0.0
    %84 = vmatprep.subr.mxu0 0.0
    %85 = vmatpush1.msra.mxu0 0.0
    %86 = vmatprep.subr.mxu0 0.0
    %87 = vmatpush1.msra.mxu0 0.0
    %88 = vmatprep.subr.mxu0 0.0
    %89 = vmatpush1.msra.mxu0 0.0
    %90 = vmatprep.subr.mxu0 0.0
    %91 = vmatpush1.msra.mxu0 0.0
    %92 = vmatprep.subr.mxu0 0.0
    %93 = vmatpush1.msra.mxu0 0.0
    %94 = vmatprep.subr.mxu0 0.0
    %95 = vmatpush1.msra.mxu0 0.0
    %96 = vmatprep.subr.mxu0 0.0
    %97 = vmatpush1.msra.mxu0 0.0
    %98 = vmatprep.subr.mxu0 0.0
    %99 = vmatpush1.msra.mxu0 0.0
    %100 = vmatprep.subr.mxu0 0.0
    %101 = vmatpush1.msra.mxu0 0.0
    %102 = vmatprep.subr.mxu0 0.0
    %103 = vmatpush1.msra.mxu0 0.0
    %104 = vmatprep.subr.mxu0 0.0
    %105 = vmatpush1.msra.mxu0 0.0
    %106 = vmatprep.subr.mxu0 0.0
    %107 = vmatpush1.msra.mxu0 0.0
    %108 = vmatprep.subr.mxu0 0.0
    %109 = vmatpush1.msra.mxu0 0.0
    %110 = vmatprep.subr.mxu0 0.0
    %111 = vmatpush1.msra.mxu0 0.0
    %112 = vmatprep.subr.mxu0 0.0
    %113 = vmatpush1.msra.mxu0 0.0
    %114 = vmatprep.subr.mxu0 0.0
    %115 = vmatpush1.msra.mxu0 0.0
    %116 = vmatprep.subr.mxu0 0.0
    %117 = vmatpush1.msra.mxu0 0.0
    %118 = vmatprep.subr.mxu0 0.0
    %119 = vmatpush1.msra.mxu0 0.0
    %120 = vmatprep.subr.mxu0 0.0
    %121 = vmatpush1.msra.mxu0 0.0
    %122 = vmatprep.subr.mxu0 0.0
    %123 = vmatpush1.msra.mxu0 0.0
    %124 = vmatprep.subr.mxu0 0.0
    %125 = vmatpush1.msra.mxu0 0.0
    %126 = vmatprep.mubr.f32.mxu0 0.0
    %127 = vmatmul.mubr.f32.gmra.mrb[0].mxu0 %v60
    %v128 = vpop.f32.mrb[0].mxu0
    %v129 = vadd.f32 %v57, %v128
    %v130 = vpop.f32.mrb[0].mxu0
    %v131 = vadd.f32 %v57, %v130
    %132 = vdwg.mxu0
    %133 = vst [vmem:[#allocation5] sm:$0xff] %v129
    %134 = vst [vmem:[#allocation5 + $0x8] sm:$0xff] %v131
    %s135 = scalar_lea.vmem [#allocation2], 48
    %v136 = vld [vmem:[%s135] sm:$0xff]
    %v137 = vld [vmem:[%s135 + $0x8] sm:$0xff]
    %v138 = vld [vmem:[%s135 + $0x10] sm:$0xff]
    %v139 = vld [vmem:[%s135 + $0x18] sm:$0xff]
    %v140 = vld [vmem:[%s135 + $0x20] sm:$0xff]
    %v141 = vld [vmem:[%s135 + $0x28] sm:$0xff]
    %142 = vmatprep.subr.mxu0 %v137
    %143 = vmatpush1.msra.mxu0 %v136
    %144 = vmatprep.subr.mxu0 %v139
    %145 = vmatpush1.msra.mxu0 %v138
    %146 = vmatprep.subr.mxu0 %v141
    %147 = vmatpush1.msra.mxu0 %v140
    %148 = vmatprep.subr.mxu0 0.0
    %149 = vmatpush1.msra.mxu0 0.0
    %150 = vmatprep.subr.mxu0 0.0
    %151 = vmatpush1.msra.mxu0 0.0
    %152 = vmatprep.subr.mxu0 0.0
    %153 = vmatpush1.msra.mxu0 0.0
    %154 = vmatprep.subr.mxu0 0.0
    %155 = vmatpush1.msra.mxu0 0.0
    %156 = vmatprep.subr.mxu0 0.0
    %157 = vmatpush1.msra.mxu0 0.0
    %158 = vmatprep.subr.mxu0 0.0
    %159 = vmatpush1.msra.mxu0 0.0
    %160 = vmatprep.subr.mxu0 0.0
    %161 = vmatpush1.msra.mxu0 0.0
    %162 = vmatprep.subr.mxu0 0.0
    %163 = vmatpush1.msra.mxu0 0.0
    %164 = vmatprep.subr.mxu0 0.0
    %165 = vmatpush1.msra.mxu0 0.0
    %166 = vmatprep.subr.mxu0 0.0
    %167 = vmatpush1.msra.mxu0 0.0
    %168 = vmatprep.subr.mxu0 0.0
    %169 = vmatpush1.msra.mxu0 0.0
    %170 = vmatprep.subr.mxu0 0.0
    %171 = vmatpush1.msra.mxu0 0.0
    %172 = vmatprep.subr.mxu0 0.0
    %173 = vmatpush1.msra.mxu0 0.0
    %174 = vmatprep.subr.mxu0 0.0
    %175 = vmatpush1.msra.mxu0 0.0
    %176 = vmatprep.subr.mxu0 0.0
    %177 = vmatpush1.msra.mxu0 0.0
    %178 = vmatprep.subr.mxu0 0.0
    %179 = vmatpush1.msra.mxu0 0.0
    %180 = vmatprep.subr.mxu0 0.0
    %181 = vmatpush1.msra.mxu0 0.0
    %182 = vmatprep.subr.mxu0 0.0
    %183 = vmatpush1.msra.mxu0 0.0
    %184 = vmatprep.subr.mxu0 0.0
    %185 = vmatpush1.msra.mxu0 0.0
    %186 = vmatprep.subr.mxu0 0.0
    %187 = vmatpush1.msra.mxu0 0.0
    %188 = vmatprep.subr.mxu0 0.0
    %189 = vmatpush1.msra.mxu0 0.0
    %190 = vmatprep.subr.mxu0 0.0
    %191 = vmatpush1.msra.mxu0 0.0
    %192 = vmatprep.subr.mxu0 0.0
    %193 = vmatpush1.msra.mxu0 0.0
    %194 = vmatprep.subr.mxu0 0.0
    %195 = vmatpush1.msra.mxu0 0.0
    %196 = vmatprep.subr.mxu0 0.0
    %197 = vmatpush1.msra.mxu0 0.0
    %198 = vmatprep.subr.mxu0 0.0
    %199 = vmatpush1.msra.mxu0 0.0
    %200 = vmatprep.subr.mxu0 0.0
    %201 = vmatpush1.msra.mxu0 0.0
    %202 = vmatprep.subr.mxu0 0.0
    %203 = vmatpush1.msra.mxu0 0.0
    %204 = vmatprep.subr.mxu0 0.0
    %205 = vmatpush1.msra.mxu0 0.0
    %206 = vmatprep.mubr.f32.mxu0 0.0
    %207 = vmatmul.mubr.f32.gmra.mrb[0].mxu0 %v60
    %v208 = vpop.f32.mrb[0].mxu0
    %v209 = vadd.f32 %v57, %v208
    %v210 = vpop.f32.mrb[0].mxu0
    %v211 = vadd.f32 %v57, %v210
    %212 = vdwg.mxu0
    %s213 = scalar_lea.vmem [#allocation5], 16
    %214 = vst [vmem:[%s213] sm:$0xff] %v209
    %215 = vst [vmem:[%s213 + $0x8] sm:$0xff] %v211
    // Predicated region
    $region22: #{tpu_custom_call.1} parent=1 // pred_check
      _
    $region23: #{tpu_custom_call.1} parent=1 // pred_check_branch
      %217 = sbr.rel (0) target = $region25
    $region24: #{tpu_custom_call.1} parent=1 // pred_region
      %s219 = ssub.s32 512, 512
      %220 = vsyncadd [#allocation4], %s219
      %s221 = sshll.u32 [#allocation5], 4
      %s222 = int_to_ptr.vmem [resolvable:$true] %s221
      %227 = dma.vmem_to_hbm [thread:$0]  %s222, 512, %s4, [#allocation4], 256, 256, 16
    $region25: #{tpu_custom_call.1} parent=1 // pred_fallthru
      _
    // Predicated region
    $region26: #{tpu_custom_call.1} parent=1 // pred_check
      _
    $region27: #{tpu_custom_call.1} parent=1 // pred_check_branch
      %229 = sbr.rel (0) target = $region29
    $region28: #{tpu_custom_call.1} parent=1 // pred_region
      %230 = dma.done [#allocation4], 512
    $region29: #{tpu_custom_call.1} parent=1 // pred_fallthru
      _
    %231 = vsyncpa [#allocation3], 1
    %232 = vsyncpa [#allocation4], 1

</llo_original>
